<compile_context>
chip_gen: v5e
topology: v5e:2x2
jax: 0.10.0
libtpu: 0.0.40
codegen_flags: <defaults>
</compile_context>

<pallas_src>
import functools

import numpy as np
import jax
import jax.numpy as jnp
from jax.experimental import pallas as pl
from jax.experimental.pallas import tpu as pltpu

# ---- configuration (mirrors CNNFeatureExtractor.__init__ args) --------------
VOCAB_SIZE = 50
EMB_SIZE = 32            # vocab.emb_size
NUM_LAYERS = 2           # num_layers (>= 1 supported by this kernel)
HIDDEN_SIZE = 32
KERNEL_NUM = 8
KERNEL_SIZES = (3, 4, 5)
DROPOUT = 0.5            # identity at inference

B = 2                    # batch size
L = 16                   # sequence length

K_MIN = min(KERNEL_SIZES)
K_MAX = max(KERNEL_SIZES)
NK = len(KERNEL_SIZES)
T = L - K_MIN + 1                    # shared pooled time extent (14)
L_PAD = L + (K_MAX - K_MIN)          # padded sequence length (18)


def cnn_feature_kernel(embeds_ref, convw_ref, convb_ref, mask_ref, *fc_refs,
                       num_layers, batch, t_steps, k_max):
    fc_w_refs = fc_refs[:num_layers]                # (in, out) each
    fc_b_refs = fc_refs[num_layers:2 * num_layers]  # (1, out) each
    out_ref = fc_refs[-1]                           # (B, hidden)

    # Hoist all parameter loads (no duplication inside unrolled loops).
    w_conv = convw_ref[...]                         # (K_max*E, nk*kn)
    b_conv = convb_ref[...]                         # (1, nk*kn)
    mask = mask_ref[...]                            # (B*T, nk*kn), 0/1
    fc_ws = [r[...] for r in fc_w_refs]
    fc_bs = [r[...] for r in fc_b_refs]

    # im2col: unfold K_max taps along the lane axis, stack batch rows along M.
    rows = []
    for b in range(batch):                          # static unroll (B small)
        x = embeds_ref[b]                           # (L_pad, E)
        taps = [x[j:j + t_steps, :] for j in range(k_max)]
        rows.append(jnp.concatenate(taps, axis=-1))  # (T, K_max*E)
    x_unf = jnp.concatenate(rows, axis=0)            # (B*T, K_max*E)

    # Single conv matmul for all kernel sizes and the whole batch.
    conv = jnp.dot(x_unf, w_conv, preferred_element_type=jnp.float32)
    conv = jax.nn.relu(conv + b_conv)                # (B*T, nk*kn)
    # Zero the invalid tail time-steps of the K > K_min chunks; since relu >= 0
    # this cannot change the max over the valid positions.
    conv = conv * mask

    # Max-pool over time, per batch row -> (B, nk*kn).
    feats = jnp.concatenate(
        [jnp.max(conv[b * t_steps:(b + 1) * t_steps, :], axis=0, keepdims=True)
         for b in range(batch)], axis=0)

    # Batched FC stack (Dropout is identity at inference).
    h = feats
    for layer in range(num_layers):
        h = jax.nn.relu(
            jnp.dot(h, fc_ws[layer], preferred_element_type=jnp.float32)
            + fc_bs[layer])

    out_ref[...] = h.astype(out_ref.dtype)           # single dense store


def cnn_feature_extractor(embeds, conv_ws, conv_bs, fc_ws, fc_bs):
    assert NUM_LAYERS >= 1, "kernel assumes at least one FC layer"

    # ---- parameter merge (cheap glue, done once outside the kernel) ---------
    # Conv weights (K, E, kn) -> one (K_max*E, nk*kn) matrix, taps zero-padded.
    w_merged = jnp.zeros((K_MAX * EMB_SIZE, NK * KERNEL_NUM), jnp.float32)
    for i, (K, W) in enumerate(zip(KERNEL_SIZES, conv_ws)):
        w_merged = w_merged.at[:K * EMB_SIZE,
                               i * KERNEL_NUM:(i + 1) * KERNEL_NUM].set(
            W.reshape(K * EMB_SIZE, KERNEL_NUM))
    b_merged = jnp.concatenate(conv_bs, axis=1)      # (1, nk*kn)

    # Pad the sequence with zeros so every kernel size shares T time positions.
    embeds_pad = jnp.pad(embeds, ((0, 0), (0, L_PAD - L), (0, 0)))

    # Static validity mask: position t of chunk i is valid iff t < L - K_i + 1.
    mask_np = np.zeros((B * T, NK * KERNEL_NUM), np.float32)
    for i, K in enumerate(KERNEL_SIZES):
        tk = L - K + 1
        for b in range(B):
            mask_np[b * T:b * T + tk,
                    i * KERNEL_NUM:(i + 1) * KERNEL_NUM] = 1.0
    mask = jnp.asarray(mask_np)

    inputs = ([embeds_pad, w_merged, b_merged, mask]
              + list(fc_ws) + list(fc_bs))

    def _zero_index_map(nd, i):
        return (0,) * nd

    # Every operand is tiny: give each its full shape as one block (satisfies
    # the (8,128) rule because block == full array) and let it live in VMEM for
    # the single grid step.
    in_specs = [
        pl.BlockSpec(a.shape, functools.partial(_zero_index_map, a.ndim))
        for a in inputs
    ]
    out_spec = pl.BlockSpec((B, HIDDEN_SIZE), lambda i: (0, 0))

    kernel = functools.partial(
        cnn_feature_kernel,
        num_layers=NUM_LAYERS, batch=B, t_steps=T, k_max=K_MAX)

    return pl.pallas_call(
        kernel,
        out_shape=jax.ShapeDtypeStruct((B, HIDDEN_SIZE), jnp.float32),
        grid=(1,),
        in_specs=in_specs,
        out_specs=out_spec,
        compiler_params=pltpu.CompilerParams(
            dimension_semantics=("arbitrary",)),
    )(*inputs)


def reference_forward(embeds, conv_ws, conv_bs, fc_ws, fc_bs):
    """Pure-JAX reference matching the PyTorch forward semantics."""
    feats = []
    for W, bias in zip(conv_ws, conv_bs):            # W: (K, E, kn), bias: (1, kn)
        K = W.shape[0]
        Tk = L - K + 1
        conv = sum(jnp.einsum('ble,ef->blf', embeds[:, j:j + Tk, :], W[j])
                   for j in range(K)) + bias[None, :, :]
        feats.append(jnp.max(jax.nn.relu(conv), axis=1))   # (B, kn)
    x = jnp.concatenate(feats, axis=1)                     # (B, nk*kn)
    for Wl, bl in zip(fc_ws, fc_bs):
        x = jax.nn.relu(x @ Wl + bl)
    return x


if __name__ == "__main__":
    key = jax.random.PRNGKey(0)
    keys = jax.random.split(key, 16)

    # --- deterministic synthetic parameters (shapes from __init__) ----------
    emb_table = 0.1 * jax.random.normal(keys[0], (VOCAB_SIZE, EMB_SIZE),
                                        jnp.float32)
    conv_ws, conv_bs = [], []
    for i, K in enumerate(KERNEL_SIZES):
        conv_ws.append(0.1 * jax.random.normal(keys[1 + i],
                                               (K, EMB_SIZE, KERNEL_NUM),
                                               jnp.float32))
        conv_bs.append(0.1 * jax.random.normal(keys[4 + i], (1, KERNEL_NUM),
                                               jnp.float32))
    fc_ws, fc_bs = [], []
    in_dim = len(KERNEL_SIZES) * KERNEL_NUM
    for i in range(NUM_LAYERS):
        d_in = in_dim if i == 0 else HIDDEN_SIZE
        fc_ws.append(0.1 * jax.random.normal(keys[8 + i], (d_in, HIDDEN_SIZE),
                                             jnp.float32))
        fc_bs.append(0.1 * jax.random.normal(keys[12 + i], (1, HIDDEN_SIZE),
                                             jnp.float32))

    # --- inputs: (data, lengths) as in the PyTorch forward -------------------
    data = jax.random.randint(keys[15], (B, L), 0, VOCAB_SIZE, jnp.int32)
    lengths = jnp.full((B,), L, jnp.int32)   # unused by the forward pass

    # Embedding lookup is glue (plain JAX); the hot path runs in the kernel.
    embeds = emb_table[data]                 # (B, L, E)

    out = cnn_feature_extractor(embeds, conv_ws, conv_bs, fc_ws, fc_bs)
    out = jax.block_until_ready(out)

    ref = reference_forward(embeds, conv_ws, conv_bs, fc_ws, fc_bs)
    assert out.shape == (B, HIDDEN_SIZE)
    assert jnp.allclose(out, ref, atol=2e-3, rtol=2e-3), (
        f"max abs err {jnp.max(jnp.abs(out - ref))}")

    print("KERNEL_OK")
</pallas_src>

<mosaic_0001>
module attributes {stable_mosaic.version = 11 : i64} {
  func.func @cnn_feature_kernel(%arg0: i32, %arg1: memref<2x18x32xf32, #tpu.memory_space<vmem>>, %arg2: memref<160x24xf32, #tpu.memory_space<vmem>>, %arg3: memref<1x24xf32, #tpu.memory_space<vmem>>, %arg4: memref<28x24xf32, #tpu.memory_space<vmem>>, %arg5: memref<24x32xf32, #tpu.memory_space<vmem>>, %arg6: memref<32x32xf32, #tpu.memory_space<vmem>>, %arg7: memref<1x32xf32, #tpu.memory_space<vmem>>, %arg8: memref<1x32xf32, #tpu.memory_space<vmem>>, %arg9: memref<2x32xf32, #tpu.memory_space<vmem>>) attributes {dimension_semantics = [#tpu.dimension_semantics<arbitrary>], iteration_bounds = array<i64: 1>, scalar_prefetch = 0 : i64, scratch_operands = 0 : i64, tpu.core_type = #tpu.core_type<tc>, window_params = [{pipeline_mode = #tpu.pipeline_mode<synchronous>, transform_indices = @transform_0, window_bounds = array<i64: 2, 18, 32>}, {pipeline_mode = #tpu.pipeline_mode<synchronous>, transform_indices = @transform_1, window_bounds = array<i64: 160, 24>}, {pipeline_mode = #tpu.pipeline_mode<synchronous>, transform_indices = @transform_2, window_bounds = array<i64: 1, 24>}, {pipeline_mode = #tpu.pipeline_mode<synchronous>, transform_indices = @transform_3, window_bounds = array<i64: 28, 24>}, {pipeline_mode = #tpu.pipeline_mode<synchronous>, transform_indices = @transform_4, window_bounds = array<i64: 24, 32>}, {pipeline_mode = #tpu.pipeline_mode<synchronous>, transform_indices = @transform_5, window_bounds = array<i64: 32, 32>}, {pipeline_mode = #tpu.pipeline_mode<synchronous>, transform_indices = @transform_6, window_bounds = array<i64: 1, 32>}, {pipeline_mode = #tpu.pipeline_mode<synchronous>, transform_indices = @transform_7, window_bounds = array<i64: 1, 32>}, {pipeline_mode = #tpu.pipeline_mode<synchronous>, transform_indices = @transform_8, window_bounds = array<i64: 2, 32>}]} {
    %c0 = arith.constant 0 : index
    %c0_0 = arith.constant 0 : index
    %0 = vector.load %arg2[%c0, %c0_0] : memref<160x24xf32, #tpu.memory_space<vmem>>, vector<160x24xf32>
    %c0_1 = arith.constant 0 : index
    %c0_2 = arith.constant 0 : index
    %1 = vector.load %arg3[%c0_1, %c0_2] : memref<1x24xf32, #tpu.memory_space<vmem>>, vector<1x24xf32>
    %c0_3 = arith.constant 0 : index
    %c0_4 = arith.constant 0 : index
    %2 = vector.load %arg4[%c0_3, %c0_4] : memref<28x24xf32, #tpu.memory_space<vmem>>, vector<28x24xf32>
    %c0_5 = arith.constant 0 : index
    %c0_6 = arith.constant 0 : index
    %3 = vector.load %arg5[%c0_5, %c0_6] : memref<24x32xf32, #tpu.memory_space<vmem>>, vector<24x32xf32>
    %c0_7 = arith.constant 0 : index
    %c0_8 = arith.constant 0 : index
    %4 = vector.load %arg6[%c0_7, %c0_8] : memref<32x32xf32, #tpu.memory_space<vmem>>, vector<32x32xf32>
    %c0_9 = arith.constant 0 : index
    %c0_10 = arith.constant 0 : index
    %5 = vector.load %arg7[%c0_9, %c0_10] : memref<1x32xf32, #tpu.memory_space<vmem>>, vector<1x32xf32>
    %c0_11 = arith.constant 0 : index
    %c0_12 = arith.constant 0 : index
    %6 = vector.load %arg8[%c0_11, %c0_12] : memref<1x32xf32, #tpu.memory_space<vmem>>, vector<1x32xf32>
    %c0_13 = arith.constant 0 : index
    %c0_14 = arith.constant 0 : index
    %c0_15 = arith.constant 0 : index
    %7 = vector.load %arg1[%c0_13, %c0_14, %c0_15] : memref<2x18x32xf32, #tpu.memory_space<vmem>>, vector<1x18x32xf32>
    %8 = vector.shape_cast %7 : vector<1x18x32xf32> to vector<18x32xf32>
    %9 = vector.extract_strided_slice %8 {offsets = [0, 0], sizes = [14, 32], strides = [1, 1]} : vector<18x32xf32> to vector<14x32xf32>
    %10 = vector.extract_strided_slice %8 {offsets = [1, 0], sizes = [14, 32], strides = [1, 1]} : vector<18x32xf32> to vector<14x32xf32>
    %11 = vector.extract_strided_slice %8 {offsets = [2, 0], sizes = [14, 32], strides = [1, 1]} : vector<18x32xf32> to vector<14x32xf32>
    %12 = vector.extract_strided_slice %8 {offsets = [3, 0], sizes = [14, 32], strides = [1, 1]} : vector<18x32xf32> to vector<14x32xf32>
    %13 = vector.extract_strided_slice %8 {offsets = [4, 0], sizes = [14, 32], strides = [1, 1]} : vector<18x32xf32> to vector<14x32xf32>
    %14 = tpu.concatenate %9, %10, %11, %12, %13 in 1 : vector<14x32xf32>, vector<14x32xf32>, vector<14x32xf32>, vector<14x32xf32>, vector<14x32xf32> -> vector<14x160xf32>
    %c1 = arith.constant 1 : index
    %c0_16 = arith.constant 0 : index
    %c0_17 = arith.constant 0 : index
    %15 = vector.load %arg1[%c1, %c0_16, %c0_17] : memref<2x18x32xf32, #tpu.memory_space<vmem>>, vector<1x18x32xf32>
    %16 = vector.shape_cast %15 : vector<1x18x32xf32> to vector<18x32xf32>
    %17 = vector.extract_strided_slice %16 {offsets = [0, 0], sizes = [14, 32], strides = [1, 1]} : vector<18x32xf32> to vector<14x32xf32>
    %18 = vector.extract_strided_slice %16 {offsets = [1, 0], sizes = [14, 32], strides = [1, 1]} : vector<18x32xf32> to vector<14x32xf32>
    %19 = vector.extract_strided_slice %16 {offsets = [2, 0], sizes = [14, 32], strides = [1, 1]} : vector<18x32xf32> to vector<14x32xf32>
    %20 = vector.extract_strided_slice %16 {offsets = [3, 0], sizes = [14, 32], strides = [1, 1]} : vector<18x32xf32> to vector<14x32xf32>
    %21 = vector.extract_strided_slice %16 {offsets = [4, 0], sizes = [14, 32], strides = [1, 1]} : vector<18x32xf32> to vector<14x32xf32>
    %22 = tpu.concatenate %17, %18, %19, %20, %21 in 1 : vector<14x32xf32>, vector<14x32xf32>, vector<14x32xf32>, vector<14x32xf32>, vector<14x32xf32> -> vector<14x160xf32>
    %23 = tpu.concatenate %14, %22 in 0 : vector<14x160xf32>, vector<14x160xf32> -> vector<28x160xf32>
    %cst = arith.constant dense<0.000000e+00> : vector<28x24xf32>
    %24 = tpu.matmul %23, %0, %cst {dimension_numbers = #tpu.dot_dimension_numbers<[1], [0], [0], [1], [0, 0, 1, 1], [], []>} : vector<28x160xf32>, vector<160x24xf32>, vector<28x24xf32> -> vector<28x24xf32>
    %25 = vector.broadcast %1 : vector<1x24xf32> to vector<28x24xf32>
    %26 = arith.addf %24, %25 : vector<28x24xf32>
    %cst_18 = arith.constant 0.000000e+00 : f32
    %27 = vector.broadcast %cst_18 : f32 to vector<28x24xf32>
    %28 = arith.maximumf %26, %27 : vector<28x24xf32>
    %29 = arith.mulf %28, %2 : vector<28x24xf32>
    %30 = vector.extract_strided_slice %29 {offsets = [0, 0], sizes = [14, 24], strides = [1, 1]} : vector<28x24xf32> to vector<14x24xf32>
    %cst_19 = arith.constant dense<0xFF800000> : vector<24xf32>
    %31 = vector.multi_reduction <maximumf>, %30, %cst_19 [0] : vector<14x24xf32> to vector<24xf32>
    %32 = vector.shape_cast %31 : vector<24xf32> to vector<1x24xf32>
    %33 = vector.extract_strided_slice %29 {offsets = [14, 0], sizes = [14, 24], strides = [1, 1]} : vector<28x24xf32> to vector<14x24xf32>
    %cst_20 = arith.constant dense<0xFF800000> : vector<24xf32>
    %34 = vector.multi_reduction <maximumf>, %33, %cst_20 [0] : vector<14x24xf32> to vector<24xf32>
    %35 = vector.shape_cast %34 : vector<24xf32> to vector<1x24xf32>
    %36 = tpu.concatenate %32, %35 in 0 : vector<1x24xf32>, vector<1x24xf32> -> vector<2x24xf32>
    %cst_21 = arith.constant dense<0.000000e+00> : vector<2x32xf32>
    %37 = tpu.matmul %36, %3, %cst_21 {dimension_numbers = #tpu.dot_dimension_numbers<[1], [0], [0], [1], [0, 0, 1, 1], [], []>} : vector<2x24xf32>, vector<24x32xf32>, vector<2x32xf32> -> vector<2x32xf32>
    %38 = vector.broadcast %5 : vector<1x32xf32> to vector<2x32xf32>
    %39 = arith.addf %37, %38 : vector<2x32xf32>
    %cst_22 = arith.constant 0.000000e+00 : f32
    %40 = vector.broadcast %cst_22 : f32 to vector<2x32xf32>
    %41 = arith.maximumf %39, %40 : vector<2x32xf32>
    %cst_23 = arith.constant dense<0.000000e+00> : vector<2x32xf32>
    %42 = tpu.matmul %41, %4, %cst_23 {dimension_numbers = #tpu.dot_dimension_numbers<[1], [0], [0], [1], [0, 0, 1, 1], [], []>} : vector<2x32xf32>, vector<32x32xf32>, vector<2x32xf32> -> vector<2x32xf32>
    %43 = vector.broadcast %6 : vector<1x32xf32> to vector<2x32xf32>
    %44 = arith.addf %42, %43 : vector<2x32xf32>
    %cst_24 = arith.constant 0.000000e+00 : f32
    %45 = vector.broadcast %cst_24 : f32 to vector<2x32xf32>
    %46 = arith.maximumf %44, %45 : vector<2x32xf32>
    %c0_25 = arith.constant 0 : index
    %c0_26 = arith.constant 0 : index
    %47 = vector.load %arg9[%c0_25, %c0_26] : memref<2x32xf32, #tpu.memory_space<vmem>>, vector<2x32xf32>
    tpu.vector_store %arg9[%c0_25, %c0_26], %46 {strides = array<i32>} : memref<2x32xf32, #tpu.memory_space<vmem>>, vector<2x32xf32>,
    return
  }
  func.func @transform_0(%arg0: i32) -> (i32, i32, i32) {
    %c0_i32 = arith.constant 0 : i32
    %c0_i32_0 = arith.constant 0 : i32
    %c0_i32_1 = arith.constant 0 : i32
    %c0_i32_2 = arith.constant 0 : i32
    return %c0_i32, %c0_i32_0, %c0_i32_1 : i32, i32, i32
  }
  func.func @transform_1(%arg0: i32) -> (i32, i32) {
    %c0_i32 = arith.constant 0 : i32
    %c0_i32_0 = arith.constant 0 : i32
    %c0_i32_1 = arith.constant 0 : i32
    return %c0_i32, %c0_i32_0 : i32, i32
  }
  func.func @transform_2(%arg0: i32) -> (i32, i32) {
    %c0_i32 = arith.constant 0 : i32
    %c0_i32_0 = arith.constant 0 : i32
    %c0_i32_1 = arith.constant 0 : i32
    return %c0_i32, %c0_i32_0 : i32, i32
  }
  func.func @transform_3(%arg0: i32) -> (i32, i32) {
    %c0_i32 = arith.constant 0 : i32
    %c0_i32_0 = arith.constant 0 : i32
    %c0_i32_1 = arith.constant 0 : i32
    return %c0_i32, %c0_i32_0 : i32, i32
  }
  func.func @transform_4(%arg0: i32) -> (i32, i32) {
    %c0_i32 = arith.constant 0 : i32
    %c0_i32_0 = arith.constant 0 : i32
    %c0_i32_1 = arith.constant 0 : i32
    return %c0_i32, %c0_i32_0 : i32, i32
  }
  func.func @transform_5(%arg0: i32) -> (i32, i32) {
    %c0_i32 = arith.constant 0 : i32
    %c0_i32_0 = arith.constant 0 : i32
    %c0_i32_1 = arith.constant 0 : i32
    return %c0_i32, %c0_i32_0 : i32, i32
  }
  func.func @transform_6(%arg0: i32) -> (i32, i32) {
    %c0_i32 = arith.constant 0 : i32
    %c0_i32_0 = arith.constant 0 : i32
    %c0_i32_1 = arith.constant 0 : i32
    return %c0_i32, %c0_i32_0 : i32, i32
  }
  func.func @transform_7(%arg0: i32) -> (i32, i32) {
    %c0_i32 = arith.constant 0 : i32
    %c0_i32_0 = arith.constant 0 : i32
    %c0_i32_1 = arith.constant 0 : i32
    return %c0_i32, %c0_i32_0 : i32, i32
  }
  func.func @transform_8(%arg0: i32) -> (i32, i32) {
    %c0_i32 = arith.constant 0 : i32
    %c0_i32_0 = arith.constant 0 : i32
    %c0_i32_1 = arith.constant 0 : i32
    return %c0_i32, %c0_i32_0 : i32, i32
  }
}

</mosaic_0001>

<llo_original>
// kernel: tpu_custom_call.1
$region0: #{tpu_custom_call.1}
  #allocation0 [shape = 'u32[]', space=smem, size = 0x4, offset = 0x4, fixed_abs, tag = 'smem constant byte address 0x4 - core index']
  #allocation1 [shape = 'u32[72,128]{1,0:T(1,128)}', space=vmem, size = 0x9000, scoped, tag = 'internal scratch']
  %s0 = inlined_call_operand.vmem [shape: f32[2,18,32], index: 0, kind: input, shape index: {}]
  %s1 = inlined_call_operand.vmem [shape: f32[160,24], index: 1, kind: input, shape index: {}]
  %s2 = inlined_call_operand.vmem [shape: f32[1,24], index: 2, kind: input, shape index: {}]
  %s3 = inlined_call_operand.vmem [shape: f32[28,24], index: 3, kind: input, shape index: {}]
  %s4 = inlined_call_operand.vmem [shape: f32[24,32], index: 4, kind: input, shape index: {}]
  %s5 = inlined_call_operand.vmem [shape: f32[32,32], index: 5, kind: input, shape index: {}]
  %s6 = inlined_call_operand.vmem [shape: f32[1,32], index: 6, kind: input, shape index: {}]
  %s7 = inlined_call_operand.vmem [shape: f32[1,32], index: 7, kind: input, shape index: {}]
  %s8 = inlined_call_operand.hbm [shape: f32[2,32], index: 8, kind: output, shape index: {}]
  %s9 = sld [smem:[#allocation0]]
  $region42: #{tpu_custom_call.1} parent=0
    _
  %s11 = ssub.s32 1, %s9
  %s12 = scalar_select 0, %s11, %s9
  $region1: #{tpu_custom_call.1} parent=0
    #allocation2 [shape = 'u8[1024]{0}', space=vmem, size = 0x400, scoped, tag = 'output window, operand 0, single buffered']
    #allocation3 [shape = 's32[1]{0}', space=sflag, size = 0x4, scoped, tag = 'scoped memory for tpu_custom_call.1']
    %13 = vsyncpa [#allocation3], 0
    // Predicated region
    $region2: #{tpu_custom_call.1} parent=1 // pred_check
      _
    $region3: #{tpu_custom_call.1} parent=1 // pred_check_branch
      %15 = sbr.rel (0) target = $region5
    $region4: #{tpu_custom_call.1} parent=1 // pred_region
      _
    $region5: #{tpu_custom_call.1} parent=1 // pred_fallthru
      _
    // Predicated region
    $region6: #{tpu_custom_call.1} parent=1 // pred_check
      _
    $region7: #{tpu_custom_call.1} parent=1 // pred_check_branch
      %17 = sbr.rel (0) target = $region9
    $region8: #{tpu_custom_call.1} parent=1 // pred_region
      _
    $region9: #{tpu_custom_call.1} parent=1 // pred_fallthru
      _
    // Predicated region
    $region10: #{tpu_custom_call.1} parent=1 // pred_check
      _
    $region11: #{tpu_custom_call.1} parent=1 // pred_check_branch
      %19 = sbr.rel (0) target = $region13
    $region12: #{tpu_custom_call.1} parent=1 // pred_region
      _
    $region13: #{tpu_custom_call.1} parent=1 // pred_fallthru
      _
    // Predicated region
    $region14: #{tpu_custom_call.1} parent=1 // pred_check
      _
    $region15: #{tpu_custom_call.1} parent=1 // pred_check_branch
      %21 = sbr.rel (0) target = $region17
    $region16: #{tpu_custom_call.1} parent=1 // pred_region
      _
    $region17: #{tpu_custom_call.1} parent=1 // pred_fallthru
      _
    // Predicated region
    $region18: #{tpu_custom_call.1} parent=1 // pred_check
      _
    $region19: #{tpu_custom_call.1} parent=1 // pred_check_branch
      %23 = sbr.rel (0) target = $region21
    $region20: #{tpu_custom_call.1} parent=1 // pred_region
      _
    $region21: #{tpu_custom_call.1} parent=1 // pred_fallthru
      _
    // Predicated region
    $region22: #{tpu_custom_call.1} parent=1 // pred_check
      _
    $region23: #{tpu_custom_call.1} parent=1 // pred_check_branch
      %25 = sbr.rel (0) target = $region25
    $region24: #{tpu_custom_call.1} parent=1 // pred_region
      _
    $region25: #{tpu_custom_call.1} parent=1 // pred_fallthru
      _
    // Predicated region
    $region26: #{tpu_custom_call.1} parent=1 // pred_check
      _
    $region27: #{tpu_custom_call.1} parent=1 // pred_check_branch
      %27 = sbr.rel (0) target = $region29
    $region28: #{tpu_custom_call.1} parent=1 // pred_region
      _
    $region29: #{tpu_custom_call.1} parent=1 // pred_fallthru
      _
    // Predicated region
    $region30: #{tpu_custom_call.1} parent=1 // pred_check
      _
    $region31: #{tpu_custom_call.1} parent=1 // pred_check_branch
      %29 = sbr.rel (0) target = $region33
    $region32: #{tpu_custom_call.1} parent=1 // pred_region
      _
    $region33: #{tpu_custom_call.1} parent=1 // pred_fallthru
      _
    %v30 = vld [vmem:[%s1] sm:$0xff]
    %v31 = vld [vmem:[%s1 + $0x8] sm:$0xff]
    %v32 = vld [vmem:[%s1 + $0x10] sm:$0xff]
    %v33 = vld [vmem:[%s1 + $0x18] sm:$0xff]
    %v34 = vld [vmem:[%s1 + $0x20] sm:$0xff]
    %v35 = vld [vmem:[%s1 + $0x28] sm:$0xff]
    %v36 = vld [vmem:[%s1 + $0x30] sm:$0xff]
    %v37 = vld [vmem:[%s1 + $0x38] sm:$0xff]
    %v38 = vld [vmem:[%s1 + $0x40] sm:$0xff]
    %v39 = vld [vmem:[%s1 + $0x48] sm:$0xff]
    %v40 = vld [vmem:[%s1 + $0x50] sm:$0xff]
    %v41 = vld [vmem:[%s1 + $0x58] sm:$0xff]
    %v42 = vld [vmem:[%s1 + $0x60] sm:$0xff]
    %v43 = vld [vmem:[%s1 + $0x68] sm:$0xff]
    %v44 = vld [vmem:[%s1 + $0x70] sm:$0xff]
    %v45 = vld [vmem:[%s1 + $0x78] sm:$0xff]
    %v46 = vld [vmem:[%s1 + $0x80] sm:$0xff]
    %v47 = vld [vmem:[%s1 + $0x88] sm:$0xff]
    %v48 = vld [vmem:[%s1 + $0x90] sm:$0xff]
    %v49 = vld [vmem:[%s1 + $0x98] sm:$0xff]
    %v50 = vld [vmem:[%s2] sm:$0x1]
    %v51 = vld [vmem:[%s3] sm:$0xff]
    %v52 = vld [vmem:[%s3 + $0x8] sm:$0xff]
    %v53 = vld [vmem:[%s3 + $0x10] sm:$0xff]
    %v54 = vld [vmem:[%s3 + $0x18] sm:$0xf]
    %v55 = vld [vmem:[%s4] sm:$0xff]
    %v56 = vld [vmem:[%s4 + $0x8] sm:$0xff]
    %v57 = vld [vmem:[%s4 + $0x10] sm:$0xff]
    %v58 = vld [vmem:[%s5] sm:$0xff]
    %v59 = vld [vmem:[%s5 + $0x8] sm:$0xff]
    %v60 = vld [vmem:[%s5 + $0x10] sm:$0xff]
    %v61 = vld [vmem:[%s5 + $0x18] sm:$0xff]
    %v62 = vld [vmem:[%s6] sm:$0x1]
    %v63 = vld [vmem:[%s7] sm:$0x1]
    %v64 = vld [vmem:[%s0] sm:$0xff]
    %v65 = vld [vmem:[%s0 + $0x8] sm:$0xff]
    %v66 = vld [vmem:[%s0 + $0x10] sm:$0x3]
    %vm69 = vcmask 1046528
    %v70 = vrot.slane %v64, 1
    %v71 = vrot.slane %v65, 1
    %v72 = vsel %vm69, %v70, %v71
    %73 = vrot.lane.b32.xlu0 %v72, 32
    %v74 = vpop.permute.xlu0 %73
    %75 = vrot.lane.b32.xlu0 %v71, 32
    %v76 = vpop.permute.xlu0 %75
    %vm79 = vcmask 1045504
    %v80 = vrot.slane %v64, 2
    %v81 = vrot.slane %v65, 2
    %v82 = vsel %vm79, %v80, %v81
    %83 = vrot.lane.b32.xlu0 %v82, 64
    %v84 = vpop.permute.xlu0 %83
    %85 = vrot.lane.b32.xlu0 %v81, 64
    %v86 = vpop.permute.xlu0 %85
    %vm90 = vcmask 1044480
    %v91 = vrot.slane %v64, 3
    %v92 = vrot.slane %v65, 3
    %v93 = vsel %vm90, %v91, %v92
    %v94 = vrot.slane %v66, 3
    %v95 = vsel %vm90, %v92, %v94
    %96 = vrot.lane.b32.xlu0 %v93, 96
    %v97 = vpop.permute.xlu0 %96
    %98 = vrot.lane.b32.xlu0 %v95, 96
    %v99 = vpop.permute.xlu0 %98
    %vm102 = vcmask 1043456
    %v103 = vrot.slane %v64, 4
    %v104 = vrot.slane %v65, 4
    %v105 = vsel %vm102, %v103, %v104
    %v106 = vrot.slane %v66, 4
    %v107 = vsel %vm102, %v104, %v106
    %vm109 = vcmask 261120
    %v110 = vsel %vm109, %v64, %v74
    %v111 = vsel %vm109, %v65, %v76
    %vm112 = vcmask 523264
    %v113 = vsel %vm112, %v110, %v84
    %v114 = vsel %vm112, %v111, %v86
    %vm115 = vcmask 785408
    %v116 = vsel %vm115, %v113, %v97
    %v117 = vsel %vm115, %v114, %v99
    %s118 = scalar_lea.vmem %s0, 24
    %v119 = vld [vmem:[%s118] sm:$0xff]
    %v120 = vld [vmem:[%s118 + $0x8] sm:$0xff]
    %v121 = vld [vmem:[%s118 + $0x10] sm:$0x3]
    %v124 = vrot.slane %v119, 1
    %v125 = vrot.slane %v120, 1
    %v126 = vsel %vm69, %v124, %v125
    %127 = vrot.lane.b32.xlu0 %v126, 32
    %v128 = vpop.permute.xlu0 %127
    %129 = vrot.lane.b32.xlu0 %v125, 32
    %v130 = vpop.permute.xlu0 %129
    %v133 = vrot.slane %v119, 2
    %v134 = vrot.slane %v120, 2
    %v135 = vsel %vm79, %v133, %v134
    %136 = vrot.lane.b32.xlu0 %v135, 64
    %v137 = vpop.permute.xlu0 %136
    %138 = vrot.lane.b32.xlu0 %v134, 64
    %v139 = vpop.permute.xlu0 %138
    %v143 = vrot.slane %v119, 3
    %v144 = vrot.slane %v120, 3
    %v145 = vsel %vm90, %v143, %v144
    %v146 = vrot.slane %v121, 3
    %v147 = vsel %vm90, %v144, %v146
    %148 = vrot.lane.b32.xlu0 %v145, 96
    %v149 = vpop.permute.xlu0 %148
    %150 = vrot.lane.b32.xlu0 %v147, 96
    %v151 = vpop.permute.xlu0 %150
    %v154 = vrot.slane %v119, 4
    %v155 = vrot.slane %v120, 4
    %v156 = vsel %vm102, %v154, %v155
    %v157 = vrot.slane %v121, 4
    %v158 = vsel %vm102, %v155, %v157
    %v159 = vsel %vm109, %v119, %v128
    %v160 = vsel %vm109, %v120, %v130
    %v161 = vsel %vm112, %v159, %v137
    %v162 = vsel %vm112, %v160, %v139
    %v163 = vsel %vm115, %v161, %v149
    %v164 = vsel %vm115, %v162, %v151
    %v167 = vrot.slane %v163, 2
    %v168 = vrot.slane %v156, 2
    %v169 = vrot.slane %v164, 2
    %v170 = vsel %vm79, %v167, %v169
    %v171 = vrot.slane %v158, 2
    %v172 = vsel %vm79, %v168, %v171
    %v177 = vsel %vm79, %v117, %v167
    %v178 = vsel %vm79, %v107, %v168
    %v180 = vperm.slane %v50, 0
    %v182 = vsel %vm109, %v105, 0
    %v185 = vsel %vm109, %v178, 0
    %v187 = vsel %vm109, %v172, 0
    %v189 = vsel %vm109, %v171, 0
    %191 = vmatpush.msra.mxu0 %v45
    %192 = vmatpush.msra.mxu0 %v44
    %193 = vmatpush.msra.mxu0 %v43
    %194 = vmatpush.msra.mxu0 %v42
    %195 = vmatpush.msra.mxu0 %v41
    %196 = vmatpush.msra.mxu0 %v40
    %197 = vmatpush.msra.mxu0 %v39
    %198 = vmatpush.msra.mxu0 %v38
    %199 = vmatpush.msra.mxu0 %v37
    %200 = vmatpush.msra.mxu0 %v36
    %201 = vmatpush.msra.mxu0 %v35
    %202 = vmatpush.msra.mxu0 %v34
    %203 = vmatpush.msra.mxu0 %v33
    %204 = vmatpush.msra.mxu0 %v32
    %205 = vmatpush.msra.mxu0 %v31
    %206 = vmatpush.msra.mxu0 %v30
    %207 = vmatmul.f32.gmra.mxu0 %v116
    %v208 = vpop.f32.mrf.mxu0
    %v209 = vadd.f32 %v180, %v208
    %210 = vmatmul.f32.gmra.mxu0 %v177
    %v211 = vpop.f32.mrf.mxu0
    %v212 = vadd.f32 %v180, %v211
    %213 = vmatmul.f32.gmra.mxu0 %v170
    %v214 = vpop.f32.mrf.mxu0
    %v215 = vadd.f32 %v180, %v214
    %216 = vmatmul.f32.gmra.mxu0 %v169
    %v217 = vpop.f32.mrf.mxu0
    %v218 = vadd.f32 %v180, %v217
    %219 = vdwg.mxu0
    %220 = vmatpush.msra.mxu0 0.0
    %221 = vmatpush.msra.mxu0 0.0
    %222 = vmatpush.msra.mxu0 0.0
    %223 = vmatpush.msra.mxu0 0.0
    %224 = vmatpush.msra.mxu0 0.0
    %225 = vmatpush.msra.mxu0 0.0
    %226 = vmatpush.msra.mxu0 0.0
    %227 = vmatpush.msra.mxu0 0.0
    %228 = vmatpush.msra.mxu0 0.0
    %229 = vmatpush.msra.mxu0 0.0
    %230 = vmatpush.msra.mxu0 0.0
    %231 = vmatpush.msra.mxu0 0.0
    %232 = vmatpush.msra.mxu0 %v49
    %233 = vmatpush.msra.mxu0 %v48
    %234 = vmatpush.msra.mxu0 %v47
    %235 = vmatpush.msra.mxu0 %v46
    %236 = vmatmul.f32.gmra.mxu0 %v182
    %v237 = vpop.f32.mrf.mxu0
    %v238 = vadd.f32 %v209, %v237
    %239 = vmatmul.f32.gmra.mxu0 %v185
    %v240 = vpop.f32.mrf.mxu0
    %v241 = vadd.f32 %v212, %v240
    %242 = vmatmul.f32.gmra.mxu0 %v187
    %v243 = vpop.f32.mrf.mxu0
    %v244 = vadd.f32 %v215, %v243
    %245 = vmatmul.f32.gmra.mxu0 %v189
    %v246 = vpop.f32.mrf.mxu0
    %v247 = vadd.f32 %v218, %v246
    %248 = vdwg.mxu0
    %v249 = vmax.f32 %v238, 0.0
    %v250 = vmax.f32 %v241, 0.0
    %v251 = vmax.f32 %v244, 0.0
    %v252 = vmax.f32 %v247, 0.0
    %v253 = vmul.f32 %v249, %v51
    %v254 = vmul.f32 %v250, %v52
    %v255 = vmul.f32 %v251, %v53
    %v256 = vmul.f32 %v252, %v54
    %vm257 = vcmask 195584
    %v258 = vsel %vm257, %v253, -inf
    %vm259 = vcmask 193536
    %v260 = vsel %vm259, %v254, -inf
    %v261 = vmax.f32 %v258, %v260
    %v262 = vrot.slane %v261, 4
    %v263 = vmax.f32 %v261, %v262
    %v264 = vrot.slane %v263, 2
    %v265 = vmax.f32 %v263, %v264
    %v266 = vrot.slane %v265, 1
    %v267 = vmax.f32 %v265, %v266
    %vm268 = vcmask 195590
    %v269 = vsel %vm268, %v254, -inf
    %v270 = vsel %vm257, %v255, -inf
    %vm271 = vcmask 191488
    %v272 = vsel %vm271, %v256, -inf
    %v273 = vmax.f32 %v269, %v270
    %v274 = vmax.f32 %v273, %v272
    %v275 = vrot.slane %v274, 4
    %v276 = vmax.f32 %v274, %v275
    %v277 = vrot.slane %v276, 2
    %v278 = vmax.f32 %v276, %v277
    %v279 = vrot.slane %v278, 1
    %v280 = vmax.f32 %v278, %v279
    %vm281 = vcmask 1040384
    %v282 = vsel %vm281, %v267, %v280
    %v284 = vperm.slane %v62, 0
    %v287 = vsel %vm257, %v282, 0
    %289 = vmatpush.msra.mxu0 0.0
    %290 = vmatpush.msra.mxu0 0.0
    %291 = vmatpush.msra.mxu0 0.0
    %292 = vmatpush.msra.mxu0 0.0
    %293 = vmatpush.msra.mxu0 0.0
    %294 = vmatpush.msra.mxu0 0.0
    %295 = vmatpush.msra.mxu0 0.0
    %296 = vmatpush.msra.mxu0 0.0
    %297 = vmatpush.msra.mxu0 0.0
    %298 = vmatpush.msra.mxu0 0.0
    %299 = vmatpush.msra.mxu0 0.0
    %300 = vmatpush.msra.mxu0 0.0
    %301 = vmatpush.msra.mxu0 0.0
    %302 = vmatpush.msra.mxu0 %v57
    %303 = vmatpush.msra.mxu0 %v56
    %304 = vmatpush.msra.mxu0 %v55
    %305 = vmatmul.f32.gmra.mxu0 %v287
    %v306 = vpop.f32.mrf.mxu0
    %v307 = vadd.f32 %v284, %v306
    %308 = vdwg.mxu0
    %v309 = vmax.f32 %v307, 0.0
    %v311 = vperm.slane %v63, 0
    %v314 = vsel %vm109, %v309, 0
    %316 = vmatpush.msra.mxu0 0.0
    %317 = vmatpush.msra.mxu0 0.0
    %318 = vmatpush.msra.mxu0 0.0
    %319 = vmatpush.msra.mxu0 0.0
    %320 = vmatpush.msra.mxu0 0.0
    %321 = vmatpush.msra.mxu0 0.0
    %322 = vmatpush.msra.mxu0 0.0
    %323 = vmatpush.msra.mxu0 0.0
    %324 = vmatpush.msra.mxu0 0.0
    %325 = vmatpush.msra.mxu0 0.0
    %326 = vmatpush.msra.mxu0 0.0
    %327 = vmatpush.msra.mxu0 0.0
    %328 = vmatpush.msra.mxu0 %v61
    %329 = vmatpush.msra.mxu0 %v60
    %330 = vmatpush.msra.mxu0 %v59
    %331 = vmatpush.msra.mxu0 %v58
    %332 = vmatmul.f32.gmra.mxu0 %v314
    %v333 = vpop.f32.mrf.mxu0
    %v334 = vadd.f32 %v311, %v333
    %335 = vdwg.mxu0
    %v336 = vmax.f32 %v334, 0.0
    %vm337 = vcmask 254976
    %338 = vst.msk [vmem:[#allocation2] sm:$0x3] %vm337, %v336
    // Predicated region
    $region34: #{tpu_custom_call.1} parent=1 // pred_check
      _
    $region35: #{tpu_custom_call.1} parent=1 // pred_check_branch
      %340 = sbr.rel (0) target = $region37
    $region36: #{tpu_custom_call.1} parent=1 // pred_region
      %342 = vsyncadd [#allocation3], 0
      %s344 = sshll.u32 [#allocation2], 4
      %s345 = int_to_ptr.vmem [resolvable:$true] %s344
      %s346 = sshll.u32 %s8, 4
      %s347 = int_to_ptr.hbm [resolvable:$true] %s346
      %349 = dma.vmem_to_hbm [thread:$0]  %s345, 32, %s347, [#allocation3]
    $region37: #{tpu_custom_call.1} parent=1 // pred_fallthru
      _
    // Predicated region
    $region38: #{tpu_custom_call.1} parent=1 // pred_check
      _
    $region39: #{tpu_custom_call.1} parent=1 // pred_check_branch
      %351 = sbr.rel (0) target = $region41
    $region40: #{tpu_custom_call.1} parent=1 // pred_region
      %353 = dma.done [#allocation3], 32
    $region41: #{tpu_custom_call.1} parent=1 // pred_fallthru
      _
    %354 = vsyncpa [#allocation3], 1

</llo_original>
